<compile_context>
chip_gen: v6e
topology: v6e:2x2x1
jax: 0.10.0
libtpu: 0.0.40
codegen_flags: <defaults>
</compile_context>

<pallas_src>
import functools
import math

import jax
import jax.numpy as jnp
from jax.experimental import pallas as pl
from jax.experimental.pallas import tpu as pltpu


def _round_up(v, m):
    return (v + m - 1) // m * m


def gcn_layer_kernel(x_k_ref, x_i_ref, wg_ref, wl_ref, a_ref, o_ref, acc_ref):
    k = pl.program_id(1)  # A-column reduction tile ("arbitrary", last grid axis)

    @pl.when(k == 0)
    def _():
        # Initialise the accumulator with the linear term for this row tile: x_i @ Wl^T.
        acc_ref[...] = jnp.dot(
            x_i_ref[...], wl_ref[...], preferred_element_type=jnp.float32
        )

    # GCN aggregation for this (row, col) tile:  acc += A[i, k] @ (x_k @ Wg^T).
    h_k = jnp.dot(
        x_k_ref[...], wg_ref[...], preferred_element_type=jnp.float32
    ).astype(a_ref.dtype)
    acc_ref[...] += jnp.dot(a_ref[...], h_k, preferred_element_type=jnp.float32)

    @pl.when(k == pl.num_programs(1) - 1)
    def _():
        o_ref[...] = acc_ref[...].astype(o_ref.dtype)


def gcn_layer(x, w_lin, w_gcn, edge_index, edge_weight, *, tm=512, tk=1024):
    """x: [N, F_in] f32; w_lin/w_gcn: [F_out, F_in] (PyTorch layout);
    edge_index: [2, E] int32 (row=src, col=dst); edge_weight: [E] f32."""
    n, f_in = x.shape
    f_out = w_lin.shape[0]

    # ---- glue: PyG gcn_norm (add_self_loops=False), dense adjacency built once at the
    #      padded shape in f32, cast to bf16 once ----
    row, col = edge_index[0], edge_index[1]
    deg = jnp.zeros((n,), jnp.float32).at[col].add(edge_weight)
    deg_inv_sqrt = jnp.where(deg > 0, jax.lax.rsqrt(deg), 0.0)
    norm = deg_inv_sqrt[row] * edge_weight * deg_inv_sqrt[col]

    # ---- tiling plan: decoupled row tile (tm) and reduction tile (tk) ----
    f_out_p = _round_up(f_out, 128)  # lane-dense output / MXU-wide weights
    if n <= 256:
        tm = tk = _round_up(max(n, 16), 16)  # single block, bf16 sublane aligned
        n_p = tm
    else:
        tm = max(16, min(tm, _round_up(n, 16)))
        tk = max(16, min(tk, _round_up(n, 16)))
        n_p = _round_up(n, math.lcm(tm, tk))
    grid = (n_p // tm, n_p // tk)  # keep grid[0] >= 2 on v7x when enlarging tm

    # Padded f32 adjacency scattered in place, then cast to bf16 once.
    a_p = (
        jnp.zeros((n_p, n_p), jnp.float32)
        .at[col, row]
        .add(norm)
        .astype(jnp.bfloat16)
    )
    # Padded node features (bf16 MXU operand; all dots accumulate in f32).
    x_p = jnp.zeros((n_p, f_in), jnp.float32).at[:n].set(x).astype(jnp.bfloat16)

    # Pre-transposed, lane-padded weights: [F_in, f_out_p].
    wg_p = (
        jnp.zeros((f_in, f_out_p), jnp.float32)
        .at[:, :f_out]
        .set(w_gcn.T)
        .astype(jnp.bfloat16)
    )
    wl_p = (
        jnp.zeros((f_in, f_out_p), jnp.float32)
        .at[:, :f_out]
        .set(w_lin.T)
        .astype(jnp.bfloat16)
    )

    cost = pl.CostEstimate(
        flops=2 * n_p * n_p * f_out_p                      # A @ H aggregation
        + 2 * grid[0] * n_p * f_in * f_out_p               # per-row-tile h_k recompute
        + 2 * n_p * f_in * f_out_p,                        # linear term at k==0
        transcendentals=0,
        bytes_accessed=2 * a_p.size                        # dominant: A stream (bf16)
        + 2 * (grid[0] + 1) * x_p.size
        + 2 * (wg_p.size + wl_p.size)
        + 4 * n_p * f_out_p,
    )

    out = pl.pallas_call(
        gcn_layer_kernel,
        out_shape=jax.ShapeDtypeStruct((n_p, f_out_p), jnp.float32),
        grid_spec=pltpu.PrefetchScalarGridSpec(
            num_scalar_prefetch=0,
            grid=grid,
            in_specs=[
                pl.BlockSpec((tk, f_in), lambda i, k: (k, 0)),       # x column tile (for H)
                pl.BlockSpec((tm, f_in), lambda i, k: (i, 0)),       # x row tile (linear term)
                pl.BlockSpec((f_in, f_out_p), lambda i, k: (0, 0)),  # Wg (resident)
                pl.BlockSpec((f_in, f_out_p), lambda i, k: (0, 0)),  # Wl (resident)
                pl.BlockSpec((tm, tk), lambda i, k: (i, k)),         # A tile (dominant stream)
            ],
            out_specs=pl.BlockSpec((tm, f_out_p), lambda i, k: (i, 0)),  # resident across k
            scratch_shapes=[pltpu.VMEM((tm, f_out_p), jnp.float32)],
        ),
        compiler_params=pltpu.CompilerParams(
            dimension_semantics=("parallel", "arbitrary"),
            vmem_limit_bytes=48 * 1024 * 1024,
        ),
        cost_estimate=cost,
    )(x_p, x_p, wg_p, wl_p, a_p)

    return out[:n, :f_out]


def reference(x, w_lin, w_gcn, edge_index, edge_weight):
    row, col = edge_index[0], edge_index[1]
    n = x.shape[0]
    deg = jnp.zeros((n,), jnp.float32).at[col].add(edge_weight)
    dis = jnp.where(deg > 0, deg ** -0.5, 0.0)
    norm = dis[row] * edge_weight * dis[col]
    h = x @ w_gcn.T
    out = jnp.zeros((n, w_gcn.shape[0]), jnp.float32).at[col].add(norm[:, None] * h[row])
    return x @ w_lin.T + out


if __name__ == "__main__":
    key = jax.random.PRNGKey(0)
    k1, k2, k3, k4, k5, k6 = jax.random.split(key, 6)

    N, F_IN, F_OUT, E = 16, 8, 16, 32

    x = jax.random.normal(k1, (N, F_IN), jnp.float32)
    # deterministic parameter init (shapes per nn.Linear / GCNConv, bias=False)
    w_lin = jax.random.normal(k2, (F_OUT, F_IN), jnp.float32) * (1.0 / F_IN ** 0.5)
    w_gcn = jax.random.normal(k3, (F_OUT, F_IN), jnp.float32) * (1.0 / F_IN ** 0.5)
    # random graph
    src = jax.random.randint(k4, (E,), 0, N, jnp.int32)
    dst = jax.random.randint(k5, (E,), 0, N, jnp.int32)
    edge_index = jnp.stack([src, dst], axis=0)
    edge_weight = jax.random.uniform(k6, (E,), jnp.float32, 0.1, 1.0)

    out = gcn_layer(x, w_lin, w_gcn, edge_index, edge_weight)
    out = jax.block_until_ready(out)

    ref = reference(x, w_lin, w_gcn, edge_index, edge_weight)
    assert out.shape == (N, F_OUT)
    # bf16 operands (f32 accumulation) -> loosened tolerance vs the f32 reference.
    assert jnp.allclose(out, ref, atol=1e-1, rtol=1e-1), "mismatch vs reference"

    print("KERNEL_OK")
</pallas_src>

<mosaic_0001>
module attributes {stable_mosaic.version = 11 : i64} {
  func.func @gcn_layer_kernel(%arg0: i32, %arg1: i32, %arg2: memref<16x8xbf16, #tpu.memory_space<vmem>>, %arg3: memref<16x8xbf16, #tpu.memory_space<vmem>>, %arg4: memref<8x128xbf16, #tpu.memory_space<vmem>>, %arg5: memref<8x128xbf16, #tpu.memory_space<vmem>>, %arg6: memref<16x16xbf16, #tpu.memory_space<vmem>>, %arg7: memref<16x128xf32, #tpu.memory_space<vmem>>, %arg8: memref<16x128xf32, #tpu.memory_space<vmem>>) attributes {dimension_semantics = [#tpu.dimension_semantics<parallel>, #tpu.dimension_semantics<arbitrary>], iteration_bounds = array<i64: 1, 1>, scalar_prefetch = 0 : i64, scratch_operands = 1 : i64, tpu.core_type = #tpu.core_type<tc>, window_params = [{transform_indices = @transform_0, window_bounds = array<i64: 16, 8>}, {transform_indices = @transform_1, window_bounds = array<i64: 16, 8>}, {pipeline_mode = #tpu.pipeline_mode<synchronous>, transform_indices = @transform_2, window_bounds = array<i64: 8, 128>}, {pipeline_mode = #tpu.pipeline_mode<synchronous>, transform_indices = @transform_3, window_bounds = array<i64: 8, 128>}, {transform_indices = @transform_4, window_bounds = array<i64: 16, 16>}, {transform_indices = @transform_5, window_bounds = array<i64: 16, 128>}]} {
    %c0_i32 = arith.constant 0 : i32
    %0 = arith.cmpi eq, %arg1, %c0_i32 : i32
    %1 = arith.extui %0 : i1 to i32
    %c0_i32_0 = arith.constant 0 : i32
    %2 = arith.cmpi ne, %1, %c0_i32_0 : i32
    scf.if %2 {
      %c0_13 = arith.constant 0 : index
      %c0_14 = arith.constant 0 : index
      %15 = vector.load %arg3[%c0_13, %c0_14] : memref<16x8xbf16, #tpu.memory_space<vmem>>, vector<16x8xbf16>
      %c0_15 = arith.constant 0 : index
      %c0_16 = arith.constant 0 : index
      %16 = vector.load %arg5[%c0_15, %c0_16] : memref<8x128xbf16, #tpu.memory_space<vmem>>, vector<8x128xbf16>
      %cst_17 = arith.constant dense<0.000000e+00> : vector<16x128xf32>
      %17 = tpu.matmul %15, %16, %cst_17 {dimension_numbers = #tpu.dot_dimension_numbers<[1], [0], [0], [1], [0, 0, 1, 1], [], []>} : vector<16x8xbf16>, vector<8x128xbf16>, vector<16x128xf32> -> vector<16x128xf32>
      %c0_18 = arith.constant 0 : index
      %c0_19 = arith.constant 0 : index
      %18 = vector.load %arg8[%c0_18, %c0_19] : memref<16x128xf32, #tpu.memory_space<vmem>>, vector<16x128xf32>
      tpu.vector_store %arg8[%c0_18, %c0_19], %17 {strides = array<i32>} : memref<16x128xf32, #tpu.memory_space<vmem>>, vector<16x128xf32>,
    } else {
    }
    %c0 = arith.constant 0 : index
    %c0_1 = arith.constant 0 : index
    %3 = vector.load %arg2[%c0, %c0_1] : memref<16x8xbf16, #tpu.memory_space<vmem>>, vector<16x8xbf16>
    %c0_2 = arith.constant 0 : index
    %c0_3 = arith.constant 0 : index
    %4 = vector.load %arg4[%c0_2, %c0_3] : memref<8x128xbf16, #tpu.memory_space<vmem>>, vector<8x128xbf16>
    %cst = arith.constant dense<0.000000e+00> : vector<16x128xf32>
    %5 = tpu.matmul %3, %4, %cst {dimension_numbers = #tpu.dot_dimension_numbers<[1], [0], [0], [1], [0, 0, 1, 1], [], []>} : vector<16x8xbf16>, vector<8x128xbf16>, vector<16x128xf32> -> vector<16x128xf32>
    %6 = arith.truncf %5 : vector<16x128xf32> to vector<16x128xbf16>
    %c0_4 = arith.constant 0 : index
    %c0_5 = arith.constant 0 : index
    %7 = vector.load %arg8[%c0_4, %c0_5] : memref<16x128xf32, #tpu.memory_space<vmem>>, vector<16x128xf32>
    %c0_6 = arith.constant 0 : index
    %c0_7 = arith.constant 0 : index
    %8 = vector.load %arg6[%c0_6, %c0_7] : memref<16x16xbf16, #tpu.memory_space<vmem>>, vector<16x16xbf16>
    %cst_8 = arith.constant dense<0.000000e+00> : vector<16x128xf32>
    %9 = tpu.matmul %8, %6, %cst_8 {dimension_numbers = #tpu.dot_dimension_numbers<[1], [0], [0], [1], [0, 0, 1, 1], [], []>} : vector<16x16xbf16>, vector<16x128xbf16>, vector<16x128xf32> -> vector<16x128xf32>
    %10 = arith.addf %7, %9 : vector<16x128xf32>
    %c0_9 = arith.constant 0 : index
    %c0_10 = arith.constant 0 : index
    %11 = vector.load %arg8[%c0_9, %c0_10] : memref<16x128xf32, #tpu.memory_space<vmem>>, vector<16x128xf32>
    tpu.vector_store %arg8[%c0_9, %c0_10], %10 {strides = array<i32>} : memref<16x128xf32, #tpu.memory_space<vmem>>, vector<16x128xf32>,
    %c0_i32_11 = arith.constant 0 : i32
    %12 = arith.cmpi eq, %arg1, %c0_i32_11 : i32
    %13 = arith.extui %12 : i1 to i32
    %c0_i32_12 = arith.constant 0 : i32
    %14 = arith.cmpi ne, %13, %c0_i32_12 : i32
    scf.if %14 {
      %c0_13 = arith.constant 0 : index
      %c0_14 = arith.constant 0 : index
      %15 = vector.load %arg8[%c0_13, %c0_14] : memref<16x128xf32, #tpu.memory_space<vmem>>, vector<16x128xf32>
      %c0_15 = arith.constant 0 : index
      %c0_16 = arith.constant 0 : index
      %16 = vector.load %arg7[%c0_15, %c0_16] : memref<16x128xf32, #tpu.memory_space<vmem>>, vector<16x128xf32>
      tpu.vector_store %arg7[%c0_15, %c0_16], %15 {strides = array<i32>} : memref<16x128xf32, #tpu.memory_space<vmem>>, vector<16x128xf32>,
    } else {
    }
    return
  }
  func.func @transform_0(%arg0: i32, %arg1: i32) -> (i32, i32) {
    %c0_i32 = arith.constant 0 : i32
    %c0_i32_0 = arith.constant 0 : i32
    return %arg1, %c0_i32 : i32, i32
  }
  func.func @transform_1(%arg0: i32, %arg1: i32) -> (i32, i32) {
    %c0_i32 = arith.constant 0 : i32
    %c0_i32_0 = arith.constant 0 : i32
    return %arg0, %c0_i32 : i32, i32
  }
  func.func @transform_2(%arg0: i32, %arg1: i32) -> (i32, i32) {
    %c0_i32 = arith.constant 0 : i32
    %c0_i32_0 = arith.constant 0 : i32
    %c0_i32_1 = arith.constant 0 : i32
    return %c0_i32, %c0_i32_0 : i32, i32
  }
  func.func @transform_3(%arg0: i32, %arg1: i32) -> (i32, i32) {
    %c0_i32 = arith.constant 0 : i32
    %c0_i32_0 = arith.constant 0 : i32
    %c0_i32_1 = arith.constant 0 : i32
    return %c0_i32, %c0_i32_0 : i32, i32
  }
  func.func @transform_4(%arg0: i32, %arg1: i32) -> (i32, i32) {
    %c0_i32 = arith.constant 0 : i32
    return %arg0, %arg1 : i32, i32
  }
  func.func @transform_5(%arg0: i32, %arg1: i32) -> (i32, i32) {
    %c0_i32 = arith.constant 0 : i32
    %c0_i32_0 = arith.constant 0 : i32
    return %arg0, %c0_i32 : i32, i32
  }
}

</mosaic_0001>

<llo_original>
// kernel: tpu_custom_call.1
$region0: #{tpu_custom_call.1}
  #allocation0 [shape = 'u32[]', space=smem, size = 0x4, offset = 0x4, fixed_abs, tag = 'smem constant byte address 0x4 - core index']
  #allocation1 [shape = 'u32[144,128]{1,0:T(1,128)}', space=vmem, size = 0x12000, scoped, tag = 'internal scratch']
  #allocation2 [shape = 'f32[16,128]{1,0:T(8,128)}', space=vmem, size = 0x2000, scoped, tag = 'scratch operand']
  %s0 = inlined_call_operand.vmem [shape: bf16[16,8], index: 0, kind: input, shape index: {}]
  %s1 = inlined_call_operand.vmem [shape: bf16[16,8], index: 1, kind: input, shape index: {}]
  %s2 = inlined_call_operand.vmem [shape: bf16[8,128], index: 2, kind: input, shape index: {}]
  %s3 = inlined_call_operand.vmem [shape: bf16[8,128], index: 3, kind: input, shape index: {}]
  %s4 = inlined_call_operand.vmem [shape: bf16[16,16], index: 4, kind: input, shape index: {}]
  %s5 = inlined_call_operand.hbm [shape: f32[16,128], index: 5, kind: output, shape index: {}]
  %s6 = sld [smem:[#allocation0]]
  $region38: #{tpu_custom_call.1} parent=0
    _
  %s8 = ssub.s32 1, %s6
  %s9 = scalar_select 0, %s8, %s6
  $region1: #{tpu_custom_call.1} parent=0
    #allocation3 [shape = 'u8[8192]{0}', space=vmem, size = 0x2000, scoped, tag = 'output window, operand 0, single buffered']
    #allocation4 [shape = 's32[1]{0}', space=sflag, size = 0x4, scoped, tag = 'scoped memory for tpu_custom_call.1']
    %10 = vsyncpa [#allocation4], 0
    // Predicated region
    $region2: #{tpu_custom_call.1} parent=1 // pred_check
      _
    $region3: #{tpu_custom_call.1} parent=1 // pred_check_branch
      %12 = sbr.rel (0) target = $region5
    $region4: #{tpu_custom_call.1} parent=1 // pred_region
      _
    $region5: #{tpu_custom_call.1} parent=1 // pred_fallthru
      _
    // Predicated region
    $region6: #{tpu_custom_call.1} parent=1 // pred_check
      _
    $region7: #{tpu_custom_call.1} parent=1 // pred_check_branch
      %14 = sbr.rel (0) target = $region9
    $region8: #{tpu_custom_call.1} parent=1 // pred_region
      _
    $region9: #{tpu_custom_call.1} parent=1 // pred_fallthru
      _
    // Predicated region
    $region10: #{tpu_custom_call.1} parent=1 // pred_check
      _
    $region11: #{tpu_custom_call.1} parent=1 // pred_check_branch
      %16 = sbr.rel (0) target = $region13
    $region12: #{tpu_custom_call.1} parent=1 // pred_region
      _
    $region13: #{tpu_custom_call.1} parent=1 // pred_fallthru
      _
    // Predicated region
    $region14: #{tpu_custom_call.1} parent=1 // pred_check
      _
    $region15: #{tpu_custom_call.1} parent=1 // pred_check_branch
      %18 = sbr.rel (0) target = $region17
    $region16: #{tpu_custom_call.1} parent=1 // pred_region
      _
    $region17: #{tpu_custom_call.1} parent=1 // pred_fallthru
      _
    // Predicated region
    $region18: #{tpu_custom_call.1} parent=1 // pred_check
      _
    $region19: #{tpu_custom_call.1} parent=1 // pred_check_branch
      %20 = sbr.rel (0) target = $region21
    $region20: #{tpu_custom_call.1} parent=1 // pred_region
      _
    $region21: #{tpu_custom_call.1} parent=1 // pred_fallthru
      _
    %p22 = scmp.eq.s32.totalorder 0, 0
    // Predicated region
    $region22: #{tpu_custom_call.1} parent=1 // pred_check
      %p23 = pneg %p22
    $region23: #{tpu_custom_call.1} parent=1 // pred_check_branch
      %25 = sbr.rel (%p23) target = $region25
    $region24: #{tpu_custom_call.1} parent=1 // pred_region
      %v26 = vld [vmem:[%s1] sm:$0xf]
      %v27 = vld [vmem:[%s1 + $0x4] sm:$0xf]
      %v28 = vld [vmem:[%s3] sm:$0xf]
      %v31 = vunpack.c.l.b16 %v26
      %v32 = vunpack.c.l.b16 %v27
      %v33 = vpack.c.b16 %v32, %v31
      %vm34 = vcmask 64512
      %v36 = vsel %vm34, %v33, 0
      %vm38 = vcmask 1043456
      %v40 = vsel %vm38, %v28, 0
      %42 = vmatprep.subr.bf16.mxu0 0
      %43 = vmatpush1.bf16.msra.mxu0 0
      %44 = vmatprep.subr.bf16.mxu0 0
      %45 = vmatpush1.bf16.msra.mxu0 0
      %46 = vmatprep.subr.bf16.mxu0 0
      %47 = vmatpush1.bf16.msra.mxu0 0
      %48 = vmatprep.subr.bf16.mxu0 0
      %49 = vmatpush1.bf16.msra.mxu0 0
      %50 = vmatprep.subr.bf16.mxu0 0
      %51 = vmatpush1.bf16.msra.mxu0 0
      %52 = vmatprep.subr.bf16.mxu0 0
      %53 = vmatpush1.bf16.msra.mxu0 0
      %54 = vmatprep.subr.bf16.mxu0 0
      %55 = vmatpush1.bf16.msra.mxu0 0
      %56 = vmatprep.subr.bf16.mxu0 0
      %57 = vmatpush1.bf16.msra.mxu0 %v40
      %58 = vmatprep.subr.bf16.mxu0 0
      %59 = vmatpush2.bf16.msra.mxu0 0
      %60 = vmatprep.subr.bf16.mxu0 0
      %61 = vmatpush2.bf16.msra.mxu0 0
      %62 = vmatprep.subr.bf16.mxu0 0
      %63 = vmatpush2.bf16.msra.mxu0 0
      %64 = vmatprep.subr.bf16.mxu0 0
      %65 = vmatpush2.bf16.msra.mxu0 0
      %66 = vmatprep.subr.bf16.mxu0 0
      %67 = vmatpush2.bf16.msra.mxu0 0
      %68 = vmatprep.subr.bf16.mxu0 0
      %69 = vmatpush2.bf16.msra.mxu0 0
      %70 = vmatprep.subr.bf16.mxu0 0
      %71 = vmatpush2.bf16.msra.mxu0 0
      %72 = vmatprep.subr.bf16.mxu0 0
      %73 = vmatpush2.bf16.msra.mxu0 0
      %74 = vmatprep.mubr.bf16.mxu0 0
      %75 = vmatmul.mubr.bf16.gmra.mxu0 %v36
      %v76 = vpop.f32.mrf.mxu0
      %v77 = vadd.f32 0.0, %v76
      %v78 = vpop.f32.mrf.mxu0
      %v79 = vpop.f32.mrf.mxu0
      %v80 = vadd.f32 0.0, %v79
      %v81 = vpop.f32.mrf.mxu0
      %82 = vdwg.mxu0
      %83 = vst [vmem:[#allocation2] sm:$0xff] %v77
      %84 = vst [vmem:[#allocation2 + $0x8] sm:$0xff] %v80
    $region25: #{tpu_custom_call.1} parent=1 // pred_fallthru
      _
    %v85 = vld [vmem:[%s0] sm:$0xf]
    %v86 = vld [vmem:[%s0 + $0x4] sm:$0xf]
    %v87 = vld [vmem:[%s2] sm:$0xf]
    %v90 = vunpack.c.l.b16 %v85
    %v91 = vunpack.c.l.b16 %v86
    %v92 = vpack.c.b16 %v91, %v90
    %vm93 = vcmask 64512
    %v95 = vsel %vm93, %v92, 0
    %vm97 = vcmask 1043456
    %v99 = vsel %vm97, %v87, 0
    %101 = vmatprep.subr.bf16.mxu0 0
    %102 = vmatpush1.bf16.msra.mxu0 0
    %103 = vmatprep.subr.bf16.mxu0 0
    %104 = vmatpush1.bf16.msra.mxu0 0
    %105 = vmatprep.subr.bf16.mxu0 0
    %106 = vmatpush1.bf16.msra.mxu0 0
    %107 = vmatprep.subr.bf16.mxu0 0
    %108 = vmatpush1.bf16.msra.mxu0 0
    %109 = vmatprep.subr.bf16.mxu0 0
    %110 = vmatpush1.bf16.msra.mxu0 0
    %111 = vmatprep.subr.bf16.mxu0 0
    %112 = vmatpush1.bf16.msra.mxu0 0
    %113 = vmatprep.subr.bf16.mxu0 0
    %114 = vmatpush1.bf16.msra.mxu0 0
    %115 = vmatprep.subr.bf16.mxu0 0
    %116 = vmatpush1.bf16.msra.mxu0 %v99
    %117 = vmatprep.subr.bf16.mxu0 0
    %118 = vmatpush2.bf16.msra.mxu0 0
    %119 = vmatprep.subr.bf16.mxu0 0
    %120 = vmatpush2.bf16.msra.mxu0 0
    %121 = vmatprep.subr.bf16.mxu0 0
    %122 = vmatpush2.bf16.msra.mxu0 0
    %123 = vmatprep.subr.bf16.mxu0 0
    %124 = vmatpush2.bf16.msra.mxu0 0
    %125 = vmatprep.subr.bf16.mxu0 0
    %126 = vmatpush2.bf16.msra.mxu0 0
    %127 = vmatprep.subr.bf16.mxu0 0
    %128 = vmatpush2.bf16.msra.mxu0 0
    %129 = vmatprep.subr.bf16.mxu0 0
    %130 = vmatpush2.bf16.msra.mxu0 0
    %131 = vmatprep.subr.bf16.mxu0 0
    %132 = vmatpush2.bf16.msra.mxu0 0
    %133 = vmatprep.mubr.bf16.mxu0 0
    %134 = vmatmul.mubr.bf16.gmra.mxu0 %v95
    %v135 = vpop.f32.mrf.mxu0
    %v136 = vadd.f32 0.0, %v135
    %v137 = vpop.f32.mrf.mxu0
    %v138 = vpop.f32.mrf.mxu0
    %v139 = vadd.f32 0.0, %v138
    %v140 = vpop.f32.mrf.mxu0
    %141 = vdwg.mxu0
    %v142 = vpack.c.bf16 %v139, %v136
    %v143 = vld [vmem:[#allocation2] sm:$0xff]
    %v144 = vld [vmem:[#allocation2 + $0x8] sm:$0xff]
    %v145 = vld [vmem:[%s4] sm:$0xf]
    %v146 = vld [vmem:[%s4 + $0x4] sm:$0xf]
    %v149 = vunpack.c.l.b16 %v145
    %v150 = vunpack.c.l.b16 %v146
    %v151 = vpack.c.b16 %v150, %v149
    %vm152 = vcmask 130048
    %v154 = vsel %vm152, %v151, 0
    %156 = vmatprep.subr.bf16.mxu0 0
    %157 = vmatpush1.bf16.msra.mxu0 0
    %158 = vmatprep.subr.bf16.mxu0 0
    %159 = vmatpush1.bf16.msra.mxu0 0
    %160 = vmatprep.subr.bf16.mxu0 0
    %161 = vmatpush1.bf16.msra.mxu0 0
    %162 = vmatprep.subr.bf16.mxu0 0
    %163 = vmatpush1.bf16.msra.mxu0 0
    %164 = vmatprep.subr.bf16.mxu0 0
    %165 = vmatpush1.bf16.msra.mxu0 0
    %166 = vmatprep.subr.bf16.mxu0 0
    %167 = vmatpush1.bf16.msra.mxu0 0
    %168 = vmatprep.subr.bf16.mxu0 0
    %169 = vmatpush1.bf16.msra.mxu0 0
    %170 = vmatprep.subr.bf16.mxu0 0
    %171 = vmatpush1.bf16.msra.mxu0 %v142
    %172 = vmatprep.subr.bf16.mxu0 0
    %173 = vmatpush2.bf16.msra.mxu0 0
    %174 = vmatprep.subr.bf16.mxu0 0
    %175 = vmatpush2.bf16.msra.mxu0 0
    %176 = vmatprep.subr.bf16.mxu0 0
    %177 = vmatpush2.bf16.msra.mxu0 0
    %178 = vmatprep.subr.bf16.mxu0 0
    %179 = vmatpush2.bf16.msra.mxu0 0
    %180 = vmatprep.subr.bf16.mxu0 0
    %181 = vmatpush2.bf16.msra.mxu0 0
    %182 = vmatprep.subr.bf16.mxu0 0
    %183 = vmatpush2.bf16.msra.mxu0 0
    %184 = vmatprep.subr.bf16.mxu0 0
    %185 = vmatpush2.bf16.msra.mxu0 0
    %186 = vmatprep.subr.bf16.mxu0 0
    %187 = vmatpush2.bf16.msra.mxu0 0
    %188 = vmatprep.mubr.bf16.mxu0 0
    %189 = vmatmul.mubr.bf16.gmra.mxu0 %v154
    %v190 = vpop.f32.mrf.mxu0
    %v191 = vadd.f32 0.0, %v190
    %v192 = vpop.f32.mrf.mxu0
    %v193 = vpop.f32.mrf.mxu0
    %v194 = vadd.f32 0.0, %v193
    %v195 = vpop.f32.mrf.mxu0
    %196 = vdwg.mxu0
    %v197 = vadd.f32 %v143, %v191
    %v198 = vadd.f32 %v144, %v194
    %199 = vst [vmem:[#allocation2] sm:$0xff] %v197
    %200 = vst [vmem:[#allocation2 + $0x8] sm:$0xff] %v198
    // Predicated region
    $region26: #{tpu_custom_call.1} parent=1 // pred_check
      %p201 = pneg %p22
    $region27: #{tpu_custom_call.1} parent=1 // pred_check_branch
      %203 = sbr.rel (%p201) target = $region29
    $region28: #{tpu_custom_call.1} parent=1 // pred_region
      %v204 = vld [vmem:[#allocation2] sm:$0xff]
      %v205 = vld [vmem:[#allocation2 + $0x8] sm:$0xff]
      %206 = vst [vmem:[#allocation3] sm:$0xff] %v204
      %207 = vst [vmem:[#allocation3 + $0x8] sm:$0xff] %v205
    $region29: #{tpu_custom_call.1} parent=1 // pred_fallthru
      _
    // Predicated region
    $region30: #{tpu_custom_call.1} parent=1 // pred_check
      _
    $region31: #{tpu_custom_call.1} parent=1 // pred_check_branch
      %209 = sbr.rel (0) target = $region33
    $region32: #{tpu_custom_call.1} parent=1 // pred_region
      %s211 = ssub.s32 256, 256
      %212 = vsyncadd [#allocation4], %s211
      %s213 = sshll.u32 [#allocation3], 4
      %s214 = int_to_ptr.vmem [resolvable:$true] %s213
      %219 = dma.vmem_to_hbm [thread:$0]  %s214, 256, %s5, [#allocation4], 128, 128, 8
    $region33: #{tpu_custom_call.1} parent=1 // pred_fallthru
      _
    // Predicated region
    $region34: #{tpu_custom_call.1} parent=1 // pred_check
      _
    $region35: #{tpu_custom_call.1} parent=1 // pred_check_branch
      %221 = sbr.rel (0) target = $region37
    $region36: #{tpu_custom_call.1} parent=1 // pred_region
      %222 = dma.done [#allocation4], 256
    $region37: #{tpu_custom_call.1} parent=1 // pred_fallthru
      _
    %223 = vsyncpa [#allocation4], 1

</llo_original>
